<compile_context>
chip_gen: v7x
topology: tpu7x:2x2x1
jax: 0.10.0
libtpu: 0.0.40
codegen_flags: <defaults>
</compile_context>

<pallas_src>
import functools

import jax
import jax.numpy as jnp
import numpy as np
from jax.experimental import pallas as pl
from jax.experimental.pallas import tpu as pltpu

NEG_FILL = -1000000000.0          # matches masked_fill value in the PyTorch module
_VMEM_TILE_BUDGET = 24 * 1024 * 1024   # per-tile working-set budget (fits v7x 64 MiB)
_VMEM_LIMIT_BYTES = 64 * 1024 * 1024   # explicit scoped-VMEM limit (all generations)


def _attention_kernel(*refs, mask_fill, use_mask_input, n, f):
    if use_mask_input:
        x_ref, mask_ref, w_ref, b_ref, ctx_ref, wts_ref = refs
    else:
        x_ref, w_ref, b_ref, ctx_ref, wts_ref = refs

    x = x_ref[...]                                       # [TB, N, F] f32
    w = w_ref[...]                                       # [1, F]     f32
    b = b_ref[0]                                         # scalar from SMEM
    tb = x.shape[0]

    # attention_scores = x @ W^T + b  -> [TB, N, 1]
    if f >= 256:
        # Large feature dim: put the F-deep reduction on the (otherwise idle) MXU.
        x2d = x.reshape(tb * n, f)
        scores = jnp.dot(x2d, jnp.transpose(w),
                         preferred_element_type=jnp.float32).reshape(tb, n, 1) + b
    else:
        # Small F: VPU multiply + lane reduce; a 1-column MXU matmul is wasteful.
        scores = jnp.sum(x * w, axis=-1, keepdims=True) + b     # [TB, N, 1]

    if mask_fill:
        eff = x != -1.0                                         # [TB, N, F]
        if use_mask_input:
            eff = jnp.logical_and(eff, mask_ref[...] != -1.0)   # [TB,N,1] bcast
        efff = eff.astype(jnp.float32)                          # [TB, N, F]

        # Factored softmax over axis=1 (nodes), equivalent to PyTorch's
        # masked_fill + softmax but with only TB*(N+F) exps instead of TB*N*F:
        #   exp(score - mx_f) = exp(score - g) * exp(g - mx_f)   for valid entries
        #   masked entries -> 0 (PyTorch: exp(-1e9 - mx_f) underflows to 0)
        #   fully-masked columns -> uniform 1/N (PyTorch: exp(0) = 1 everywhere)
        neg = jnp.float32(NEG_FILL)
        g = jnp.max(scores, axis=1, keepdims=True)              # [TB, 1, 1]
        exp_n = jnp.exp(scores - g)                             # [TB, N, 1]  (N exps)

        masked_scores = jnp.where(eff, scores, neg)             # [TB, N, F]  (VALU)
        mx_f = jnp.max(masked_scores, axis=1, keepdims=True)    # [TB, 1, F]  (XLU)
        col_valid = mx_f > neg * 0.5                            # [TB, 1, F]
        mx_safe = jnp.where(col_valid, mx_f, g)                 # avoid inf in corr
        corr = jnp.exp(g - mx_safe)                             # [TB, 1, F]  (F exps)
        # Note: if the per-feature gap (g - mx_f) exceeds ~88 the factored form
        # under/overflows where the reference would not; not reachable for
        # normally-scaled attention scores.

        e = jnp.where(col_valid, efff * (exp_n * corr), 1.0)    # [TB, N, F]
        s = jnp.sum(e, axis=1, keepdims=True)                   # [TB, 1, F]
        wts = e * pl.reciprocal(s, approx=False)                # [TB, N, F]
        ctx = jnp.sum(x * wts, axis=1)                          # [TB, F]
        wts_out = wts.reshape(tb, n * f)                        # lane-dense store
    else:
        mx = jnp.max(scores, axis=1, keepdims=True)             # [TB, 1, 1]
        e = jnp.exp(scores - mx)                                # [TB, N, 1]
        s = jnp.sum(e, axis=1, keepdims=True)
        wts = e * pl.reciprocal(s, approx=False)                # [TB, N, 1]
        ctx = jnp.sum(x * wts, axis=1)                          # [TB, F]
        wts_out = wts.reshape(tb, n)                            # lane-dense store

    ctx_ref[...] = ctx.astype(ctx_ref.dtype)
    wts_ref[...] = wts_out.astype(wts_ref.dtype)


def _choose_batch_tile(B, N, F, itemsize=4):
    """Largest batch tile whose double-buffered working set fits the budget."""
    # x tile + mask tile + wts tile + ctx tile, double-buffered by the pipeliner.
    per_row = 2 * (N * F + N + N * F + F) * itemsize
    tb = max(int(_VMEM_TILE_BUDGET // max(per_row, 1)), 1)
    if tb >= B:
        return B
    # Keep the tiled sublane dim a multiple of 8 (layout constraint).
    return max(8, (tb // 8) * 8)


def attention_forward(x, weight, bias, mask=None):
    """Pallas AttentionLayer forward.

    x      : [B, N, F] float32
    weight : [1, F]    float32  (nn.Linear(F, 1).weight layout)
    bias   : [1]       float32
    mask   : optional; participates only if mask.ndim == x.ndim (as in PyTorch).
    returns: (context [B, F], attention_weights [B, N, F] if mask else [B, N, 1])
    """
    B, N, F = x.shape
    mask_fill = mask is not None
    use_mask_input = mask_fill and (mask.ndim == x.ndim)

    w2d = weight.reshape(1, F).astype(jnp.float32)
    b1d = bias.reshape(1).astype(jnp.float32)

    TB = _choose_batch_tile(B, N, F)
    grid = (pl.cdiv(B, TB),)

    kernel = functools.partial(_attention_kernel, mask_fill=mask_fill,
                               use_mask_input=use_mask_input, n=N, f=F)

    in_specs = [pl.BlockSpec((TB, N, F), lambda i: (i, 0, 0))]          # x (batch-tiled)
    operands = [x]
    if use_mask_input:
        mshape = mask.shape
        in_specs.append(pl.BlockSpec((TB,) + tuple(mshape[1:]),
                                     lambda i: (i,) + (0,) * (len(mshape) - 1)))
        operands.append(mask)
    in_specs += [
        pl.BlockSpec((1, F), lambda i: (0, 0)),                         # weight: constant block, fetched once
        pl.BlockSpec(memory_space=pltpu.MemorySpace.SMEM),              # bias: SMEM scalar
    ]
    operands += [w2d, b1d]

    wts_cols = N * F if mask_fill else N                                # lane-dense slab width

    ctx, wts_flat = pl.pallas_call(
        kernel,
        out_shape=(jax.ShapeDtypeStruct((B, F), x.dtype),
                   jax.ShapeDtypeStruct((B, wts_cols), x.dtype)),
        grid=grid,
        in_specs=in_specs,
        out_specs=(pl.BlockSpec((TB, F), lambda i: (i, 0)),
                   pl.BlockSpec((TB, wts_cols), lambda i: (i, 0))),
        compiler_params=pltpu.CompilerParams(
            dimension_semantics=("parallel",),           # batch tiles independent; uses both TCs on v7x
            vmem_limit_bytes=_VMEM_LIMIT_BYTES),
    )(*operands)

    # Reshape the lane-dense slab back to the PyTorch output shape (free in XLA).
    wts = wts_flat.reshape(B, N, F) if mask_fill else wts_flat.reshape(B, N, 1)
    # TODO(synk): optional bf16 carry for x / weights output would ~halve HBM
    # traffic (the kernel is bandwidth-bound); kept f32 for exact parity here.
    return ctx, wts


def _reference_forward(x, weight, bias, mask=None):
    """Pure-JAX replica of the PyTorch forward for verification."""
    scores = jnp.einsum('bnf,of->bno', x, weight) + bias.reshape(1, 1, -1)
    if mask is not None:
        if mask.ndim == x.ndim:
            m = (mask != -1).astype(x.dtype) * (x != -1).astype(x.dtype)
        else:
            m = (x != -1).astype(x.dtype)
        scores = jnp.where(m == 0, jnp.float32(NEG_FILL), scores)
    wts = jax.nn.softmax(scores, axis=1)
    ctx = jnp.sum(x * wts, axis=1)
    return ctx, wts


if __name__ == "__main__":
    # Small shapes consistent with the module: batch=2, seq/nodes=8, features=32.
    B, N, F = 2, 8, 32

    key = jax.random.PRNGKey(0)
    kx, kmiss, kmask, kw, kb = jax.random.split(key, 5)

    x = jax.random.normal(kx, (B, N, F), dtype=jnp.float32)
    # Inject some "-1" sentinel values so the (x != -1) mask path is exercised.
    miss = jax.random.bernoulli(kmiss, 0.1, (B, N, F))
    x = jnp.where(miss, jnp.float32(-1.0), x)

    # Binary validity mask [B, N, 1] (same ndim as x -> first PyTorch branch).
    mask = jax.random.bernoulli(kmask, 0.8, (B, N, 1)).astype(jnp.float32)

    # nn.Linear(F, 1)-style deterministic init.
    limit = float(1.0 / np.sqrt(F))
    weight = jax.random.uniform(kw, (1, F), minval=-limit, maxval=limit,
                                dtype=jnp.float32)
    bias = jax.random.uniform(kb, (1,), minval=-limit, maxval=limit,
                              dtype=jnp.float32)

    # --- masked path -------------------------------------------------------
    ctx, wts = attention_forward(x, weight, bias, mask=mask)
    ctx = jax.block_until_ready(ctx)
    wts = jax.block_until_ready(wts)
    ctx_ref, wts_ref = _reference_forward(x, weight, bias, mask=mask)
    np.testing.assert_allclose(np.asarray(ctx), np.asarray(ctx_ref),
                               rtol=1e-4, atol=1e-5)
    np.testing.assert_allclose(np.asarray(wts), np.asarray(wts_ref),
                               rtol=1e-4, atol=1e-5)

    # --- no-mask path (no mask operand is DMA'd at all) --------------------
    ctx2, wts2 = attention_forward(x, weight, bias, mask=None)
    ctx2 = jax.block_until_ready(ctx2)
    wts2 = jax.block_until_ready(wts2)
    ctx2_ref, wts2_ref = _reference_forward(x, weight, bias, mask=None)
    np.testing.assert_allclose(np.asarray(ctx2), np.asarray(ctx2_ref),
                               rtol=1e-4, atol=1e-5)
    np.testing.assert_allclose(np.asarray(wts2), np.asarray(wts2_ref),
                               rtol=1e-4, atol=1e-5)

    print("KERNEL_OK")
</pallas_src>

<mosaic_0001>
module attributes {stable_mosaic.version = 11 : i64} {
  func.func @_attention_kernel(%arg0: i32, %arg1: memref<2x8x32xf32, #tpu.memory_space<vmem>>, %arg2: memref<2x8x1xf32, #tpu.memory_space<vmem>>, %arg3: memref<1x32xf32, #tpu.memory_space<vmem>>, %arg4: memref<1xf32, #tpu.memory_space<smem>>, %arg5: memref<2x32xf32, #tpu.memory_space<vmem>>, %arg6: memref<2x256xf32, #tpu.memory_space<vmem>>) attributes {dimension_semantics = [#tpu.dimension_semantics<parallel>], iteration_bounds = array<i64: 1>, scalar_prefetch = 0 : i64, scratch_operands = 0 : i64, tpu.core_type = #tpu.core_type<tc>, window_params = [{transform_indices = @transform_0, window_bounds = array<i64: 2, 8, 32>}, {transform_indices = @transform_1, window_bounds = array<i64: 2, 8, 1>}, {pipeline_mode = #tpu.pipeline_mode<synchronous>, transform_indices = @transform_2, window_bounds = array<i64: 1, 32>}, {transform_indices = @transform_3, window_bounds = array<i64: 1>}, {transform_indices = @transform_4, window_bounds = array<i64: 2, 32>}, {transform_indices = @transform_5, window_bounds = array<i64: 2, 256>}]} {
    %c0 = arith.constant 0 : index
    %c0_0 = arith.constant 0 : index
    %c0_1 = arith.constant 0 : index
    %0 = vector.load %arg1[%c0, %c0_0, %c0_1] : memref<2x8x32xf32, #tpu.memory_space<vmem>>, vector<2x8x32xf32>
    %c0_2 = arith.constant 0 : index
    %c0_3 = arith.constant 0 : index
    %1 = vector.load %arg3[%c0_2, %c0_3] : memref<1x32xf32, #tpu.memory_space<vmem>>, vector<1x32xf32>
    %c0_4 = arith.constant 0 : index
    %2 = memref.load %arg4[%c0_4] : memref<1xf32, #tpu.memory_space<smem>>
    %3 = vector.shape_cast %1 : vector<1x32xf32> to vector<1x1x32xf32>
    %4 = vector.broadcast %3 : vector<1x1x32xf32> to vector<2x8x32xf32>
    %5 = arith.mulf %0, %4 : vector<2x8x32xf32>
    %cst = arith.constant dense<0.000000e+00> : vector<2x8xf32>
    %6 = vector.multi_reduction <add>, %5, %cst [2] : vector<2x8x32xf32> to vector<2x8xf32>
    %7 = vector.shape_cast %6 : vector<2x8xf32> to vector<2x8x1xf32>
    %8 = vector.broadcast %2 : f32 to vector<2x8x1xf32>
    %9 = arith.addf %7, %8 : vector<2x8x1xf32>
    %cst_5 = arith.constant -1.000000e+00 : f32
    %10 = vector.broadcast %cst_5 : f32 to vector<2x8x32xf32>
    %11 = arith.cmpf one, %0, %10 : vector<2x8x32xf32>
    %c0_6 = arith.constant 0 : index
    %c0_7 = arith.constant 0 : index
    %c0_8 = arith.constant 0 : index
    %12 = vector.load %arg2[%c0_6, %c0_7, %c0_8] : memref<2x8x1xf32, #tpu.memory_space<vmem>>, vector<2x8x1xf32>
    %cst_9 = arith.constant -1.000000e+00 : f32
    %13 = vector.broadcast %cst_9 : f32 to vector<2x8x1xf32>
    %14 = arith.cmpf one, %12, %13 : vector<2x8x1xf32>
    %15 = vector.broadcast %14 : vector<2x8x1xi1> to vector<2x8x32xi1>
    %16 = arith.andi %11, %15 : vector<2x8x32xi1>
    %17 = arith.extui %16 : vector<2x8x32xi1> to vector<2x8x32xi32>
    %18 = arith.sitofp %17 : vector<2x8x32xi32> to vector<2x8x32xf32>
    %cst_10 = arith.constant dense<0xFF800000> : vector<2x1xf32>
    %19 = vector.multi_reduction <maximumf>, %9, %cst_10 [1] : vector<2x8x1xf32> to vector<2x1xf32>
    %20 = vector.shape_cast %19 : vector<2x1xf32> to vector<2x1x1xf32>
    %21 = vector.broadcast %20 : vector<2x1x1xf32> to vector<2x8x1xf32>
    %22 = arith.subf %9, %21 : vector<2x8x1xf32>
    %23 = math.exp %22 : vector<2x8x1xf32>
    %cst_11 = arith.constant -1.000000e+09 : f32
    %24 = vector.shape_cast %9 : vector<2x8x1xf32> to vector<2x8x1xf32>
    %25 = vector.broadcast %24 : vector<2x8x1xf32> to vector<2x8x32xf32>
    %26 = vector.broadcast %cst_11 : f32 to vector<2x8x32xf32>
    %27 = arith.select %16, %25, %26 : vector<2x8x32xi1>, vector<2x8x32xf32>
    %cst_12 = arith.constant dense<0xFF800000> : vector<2x32xf32>
    %28 = vector.multi_reduction <maximumf>, %27, %cst_12 [1] : vector<2x8x32xf32> to vector<2x32xf32>
    %29 = vector.shape_cast %28 : vector<2x32xf32> to vector<2x1x32xf32>
    %cst_13 = arith.constant -1.000000e+09 : f32
    %cst_14 = arith.constant 5.000000e-01 : f32
    %30 = arith.mulf %cst_13, %cst_14 : f32
    %31 = vector.broadcast %30 : f32 to vector<2x1x32xf32>
    %32 = arith.cmpf ogt, %29, %31 : vector<2x1x32xf32>
    %33 = vector.shape_cast %20 : vector<2x1x1xf32> to vector<2x1x1xf32>
    %34 = vector.broadcast %33 : vector<2x1x1xf32> to vector<2x1x32xf32>
    %35 = arith.select %32, %29, %34 : vector<2x1x32xi1>, vector<2x1x32xf32>
    %36 = vector.broadcast %20 : vector<2x1x1xf32> to vector<2x1x32xf32>
    %37 = arith.subf %36, %35 : vector<2x1x32xf32>
    %38 = math.exp %37 : vector<2x1x32xf32>
    %39 = vector.broadcast %23 : vector<2x8x1xf32> to vector<2x8x32xf32>
    %40 = vector.broadcast %38 : vector<2x1x32xf32> to vector<2x8x32xf32>
    %41 = arith.mulf %39, %40 : vector<2x8x32xf32>
    %42 = arith.mulf %18, %41 : vector<2x8x32xf32>
    %cst_15 = arith.constant 1.000000e+00 : f32
    %43 = vector.shape_cast %32 : vector<2x1x32xi1> to vector<2x1x32xi1>
    %44 = vector.broadcast %43 : vector<2x1x32xi1> to vector<2x8x32xi1>
    %45 = vector.broadcast %cst_15 : f32 to vector<2x8x32xf32>
    %46 = arith.select %44, %42, %45 : vector<2x8x32xi1>, vector<2x8x32xf32>
    %cst_16 = arith.constant dense<0.000000e+00> : vector<2x32xf32>
    %47 = vector.multi_reduction <add>, %46, %cst_16 [1] : vector<2x8x32xf32> to vector<2x32xf32>
    %48 = vector.shape_cast %47 : vector<2x32xf32> to vector<2x1x32xf32>
    %49 = tpu.reciprocal %48 : vector<2x1x32xf32> -> vector<2x1x32xf32>
    %50 = vector.broadcast %49 : vector<2x1x32xf32> to vector<2x8x32xf32>
    %51 = arith.mulf %46, %50 : vector<2x8x32xf32>
    %52 = arith.mulf %0, %51 : vector<2x8x32xf32>
    %cst_17 = arith.constant dense<0.000000e+00> : vector<2x32xf32>
    %53 = vector.multi_reduction <add>, %52, %cst_17 [1] : vector<2x8x32xf32> to vector<2x32xf32>
    %54 = vector.shape_cast %51 : vector<2x8x32xf32> to vector<2x256xf32>
    %c0_18 = arith.constant 0 : index
    %c0_19 = arith.constant 0 : index
    %55 = vector.load %arg5[%c0_18, %c0_19] : memref<2x32xf32, #tpu.memory_space<vmem>>, vector<2x32xf32>
    tpu.vector_store %arg5[%c0_18, %c0_19], %53 {strides = array<i32>} : memref<2x32xf32, #tpu.memory_space<vmem>>, vector<2x32xf32>,
    %c0_20 = arith.constant 0 : index
    %c0_21 = arith.constant 0 : index
    %56 = vector.load %arg6[%c0_20, %c0_21] : memref<2x256xf32, #tpu.memory_space<vmem>>, vector<2x256xf32>
    tpu.vector_store %arg6[%c0_20, %c0_21], %54 {strides = array<i32>} : memref<2x256xf32, #tpu.memory_space<vmem>>, vector<2x256xf32>,
    return
  }
  func.func @transform_0(%arg0: i32) -> (i32, i32, i32) {
    %c0_i32 = arith.constant 0 : i32
    %c0_i32_0 = arith.constant 0 : i32
    %c0_i32_1 = arith.constant 0 : i32
    return %arg0, %c0_i32, %c0_i32_0 : i32, i32, i32
  }
  func.func @transform_1(%arg0: i32) -> (i32, i32, i32) {
    %c0_i32 = arith.constant 0 : i32
    %c0_i32_0 = arith.constant 0 : i32
    %c0_i32_1 = arith.constant 0 : i32
    return %arg0, %c0_i32, %c0_i32_0 : i32, i32, i32
  }
  func.func @transform_2(%arg0: i32) -> (i32, i32) {
    %c0_i32 = arith.constant 0 : i32
    %c0_i32_0 = arith.constant 0 : i32
    %c0_i32_1 = arith.constant 0 : i32
    return %c0_i32, %c0_i32_0 : i32, i32
  }
  func.func @transform_3(%arg0: i32) -> i32 {
    %c0_i32 = arith.constant 0 : i32
    %c0_i32_0 = arith.constant 0 : i32
    return %c0_i32 : i32
  }
  func.func @transform_4(%arg0: i32) -> (i32, i32) {
    %c0_i32 = arith.constant 0 : i32
    %c0_i32_0 = arith.constant 0 : i32
    return %arg0, %c0_i32 : i32, i32
  }
  func.func @transform_5(%arg0: i32) -> (i32, i32) {
    %c0_i32 = arith.constant 0 : i32
    %c0_i32_0 = arith.constant 0 : i32
    return %arg0, %c0_i32 : i32, i32
  }
}

</mosaic_0001>

<llo_original>
// kernel: tpu_custom_call.1
$region0: #{tpu_custom_call.1}
  #allocation0 [shape = 'u32[]', space=smem, size = 0x4, offset = 0x4, fixed_abs, tag = 'smem constant byte address 0x4 - core index']
  #allocation1 [shape = 'u32[144,128]{1,0:T(1,128)}', space=vmem, size = 0x12000, scoped, tag = 'internal scratch']
  #allocation2 [shape = 'f32[1]{0:T(128)S(6)}', space=smem, size = 0x200, scoped, tag = 'scoped memory for tpu_custom_call.1']
  %s0 = inlined_call_operand.hbm [shape: f32[2,8,32], index: 0, kind: input, shape index: {}]
  %s1 = inlined_call_operand.hbm [shape: f32[2,8,1], index: 1, kind: input, shape index: {}]
  %s2 = inlined_call_operand.hbm [shape: f32[1,32], index: 2, kind: input, shape index: {}]
  %s3 = inlined_call_operand.<no memory space> [shape: f32[1], index: 3, kind: input, shape index: {}]
  %s4 = inlined_call_operand.hbm [shape: f32[2,32], index: 4, kind: output, shape index: {0}]
  %s5 = inlined_call_operand.hbm [shape: f32[2,256], index: 5, kind: output, shape index: {1}]
  %6 = xla_tuple %s4, %s5
  %s7 = sld [smem:[#allocation0]]
  $region46: #{tpu_custom_call.1} parent=0
    _
  %s9 = ssub.s32 1, %s7
  %s10 = scalar_select 0, %s9, %s7
  %11 = sst [smem:[#allocation2]] %s3
  $region1: #{tpu_custom_call.1} parent=0
    #allocation3 [shape = 'u8[8192]{0}', space=vmem, size = 0x2000, scoped, tag = 'input window, operand 0, single buffered']
    #allocation4 [shape = 's32[1]{0}', space=sflag, size = 0x4, scoped, tag = 'scoped memory for tpu_custom_call.1']
    #allocation5 [shape = 's32[1]{0}', space=sflag, size = 0x4, scoped, tag = 'scoped memory for tpu_custom_call.1']
    #allocation6 [shape = 'u8[8192]{0}', space=vmem, size = 0x2000, scoped, tag = 'input window, operand 1, single buffered']
    #allocation7 [shape = 's32[1]{0}', space=sflag, size = 0x4, scoped, tag = 'scoped memory for tpu_custom_call.1']
    #allocation8 [shape = 'u8[512]{0}', space=vmem, size = 0x400, scoped, tag = 'input window, operand 2, single buffered']
    #allocation9 [shape = 'u8[1024]{0}', space=vmem, size = 0x400, scoped, tag = 'output window, operand 0, single buffered']
    #allocation10 [shape = 'u8[2048]{0}', space=vmem, size = 0x800, scoped, tag = 'output window, operand 1, single buffered']
    #allocation11 [shape = 's32[1]{0}', space=sflag, size = 0x4, scoped, tag = 'scoped memory for tpu_custom_call.1']
    %12 = vsyncpa [#allocation4], 0
    %13 = vsyncpa [#allocation7], 0
    %14 = vsyncpa [#allocation5], 0
    %15 = vsyncpa [#allocation11], 0
    // Predicated region
    $region2: #{tpu_custom_call.1} parent=1 // pred_check
      _
    $region3: #{tpu_custom_call.1} parent=1 // pred_check_branch
      %17 = sbr.rel (0) target = $region5
    $region4: #{tpu_custom_call.1} parent=1 // pred_region
      %s19 = ssub.s32 256, 256
      %20 = vsyncadd [#allocation4], %s19
      %s21 = sshll.u32 [#allocation3], 4
      %s22 = int_to_ptr.vmem [resolvable:$true] %s21
      %27 = dma.hbm_to_vmem [thread:$0]  %s0, 256, %s22, [#allocation4], 128, 128, 8
    $region5: #{tpu_custom_call.1} parent=1 // pred_fallthru
      _
    // Predicated region
    $region6: #{tpu_custom_call.1} parent=1 // pred_check
      _
    $region7: #{tpu_custom_call.1} parent=1 // pred_check_branch
      %29 = sbr.rel (0) target = $region9
    $region8: #{tpu_custom_call.1} parent=1 // pred_region
      %s31 = ssub.s32 256, 256
      %32 = vsyncadd [#allocation7], %s31
      %s33 = sshll.u32 [#allocation6], 4
      %s34 = int_to_ptr.vmem [resolvable:$true] %s33
      %39 = dma.hbm_to_vmem [thread:$0]  %s1, 256, %s34, [#allocation7], 128, 128, 8
    $region9: #{tpu_custom_call.1} parent=1 // pred_fallthru
      _
    // Predicated region
    $region10: #{tpu_custom_call.1} parent=1 // pred_check
      _
    $region11: #{tpu_custom_call.1} parent=1 // pred_check_branch
      %41 = sbr.rel (0) target = $region13
    $region12: #{tpu_custom_call.1} parent=1 // pred_region
      %s43 = ssub.s32 16, 16
      %44 = vsyncadd [#allocation7], %s43
      %s46 = sshll.u32 [#allocation8], 4
      %s47 = int_to_ptr.vmem [resolvable:$true] %s46
      %49 = dma.hbm_to_vmem [thread:$0]  %s2, 16, %s47, [#allocation7]
    $region13: #{tpu_custom_call.1} parent=1 // pred_fallthru
      _
    // Predicated region
    $region14: #{tpu_custom_call.1} parent=1 // pred_check
      _
    $region15: #{tpu_custom_call.1} parent=1 // pred_check_branch
      %51 = sbr.rel (0) target = $region17
    $region16: #{tpu_custom_call.1} parent=1 // pred_region
      _
    $region17: #{tpu_custom_call.1} parent=1 // pred_fallthru
      _
    // Predicated region
    $region18: #{tpu_custom_call.1} parent=1 // pred_check
      _
    $region19: #{tpu_custom_call.1} parent=1 // pred_check_branch
      %53 = sbr.rel (0) target = $region21
    $region20: #{tpu_custom_call.1} parent=1 // pred_region
      %54 = dma.done [#allocation4], 256
    $region21: #{tpu_custom_call.1} parent=1 // pred_fallthru
      _
    // Predicated region
    $region22: #{tpu_custom_call.1} parent=1 // pred_check
      _
    $region23: #{tpu_custom_call.1} parent=1 // pred_check_branch
      %56 = sbr.rel (0) target = $region25
    $region24: #{tpu_custom_call.1} parent=1 // pred_region
      %57 = dma.done [#allocation7], 256
    $region25: #{tpu_custom_call.1} parent=1 // pred_fallthru
      _
    // Predicated region
    $region26: #{tpu_custom_call.1} parent=1 // pred_check
      _
    $region27: #{tpu_custom_call.1} parent=1 // pred_check_branch
      %59 = sbr.rel (0) target = $region29
    $region28: #{tpu_custom_call.1} parent=1 // pred_region
      %60 = dma.done [#allocation7], 16
    $region29: #{tpu_custom_call.1} parent=1 // pred_fallthru
      _
    %v61 = vld [vmem:[#allocation3] sm:$0xff]
    %v62 = vld [vmem:[#allocation3 + $0x8] sm:$0xff]
    %v63 = vld [vmem:[#allocation8] sm:$0x1]
    %s64 = sld [smem:[#allocation2]]
    %v66 = vlaneseq
    %v67 = vshrl.u32 %v66, 7
    %v68 = vsub.s32 0, %v67
    %v69 = vrot.slane %v63, %v68
    %v71 = vmul.f32 %v61, %v69
    %v72 = vmul.f32 %v62, %v69
    %vm73 = vcmask 261120
    %v74 = vsel %vm73, %v71, 0.0
    %75 = vadd.xlane.f32.xlu0 %v74
    %v76 = vpop.xlane.xlu0 %75
    %v77 = vsel %vm73, %v72, 0.0
    %78 = vadd.xlane.f32.xlu0 %v77
    %v79 = vpop.xlane.xlu0 %78
    %v80 = vstv %s64
    %v81 = vadd.f32 %v76, %v80
    %v82 = vadd.f32 %v79, %v80
    %vm83 = vcmp.ne.f32.partialorder %v61, -1.0
    %vm84 = vcmp.ne.f32.partialorder %v62, -1.0
    %v85 = vld [vmem:[#allocation6] sm:$0xff]
    %v86 = vld [vmem:[#allocation6 + $0x8] sm:$0xff]
    %vm87 = vcmp.ne.f32.partialorder %v85, -1.0
    %vm88 = vcmp.ne.f32.partialorder %v86, -1.0
    %v89 = vsel %vm87, 1, 0
    %v90 = vsel %vm88, 1, 0
    %91 = vset.pattern.permute.xlu0 0
    %92 = vperm.xlu0 %91, %v89
    %v93 = vpop.permute.xlu0 %92
    %94 = vset.pattern.permute.xlu0 0
    %95 = vperm.xlu0 %94, %v90
    %v96 = vpop.permute.xlu0 %95
    %vm97 = vcmp.eq.s32.totalorder %v93, 1
    %vm98 = vcmp.eq.s32.totalorder %v96, 1
    %vm99 = vmand %vm83, %vm97
    %vm100 = vmand %vm84, %vm98
    %v101 = vsel %vm99, 1, 0
    %v102 = vsel %vm100, 1, 0
    %v103 = vcvt.s32.f32 %v101
    %v104 = vcvt.s32.f32 %v102
    %v105 = vrot.slane %v81, 4
    %v106 = vmax.f32 %v81, %v105
    %v107 = vrot.slane %v106, 2
    %v108 = vmax.f32 %v106, %v107
    %v109 = vrot.slane %v108, 1
    %v110 = vmax.f32 %v108, %v109
    %v111 = vrot.slane %v82, 4
    %v112 = vmax.f32 %v82, %v111
    %v113 = vrot.slane %v112, 2
    %v114 = vmax.f32 %v112, %v113
    %v115 = vrot.slane %v114, 1
    %v116 = vmax.f32 %v114, %v115
    %v117 = vsub.f32 %v81, %v110
    %v118 = vsub.f32 %v82, %v116
    %v119 = vmul.f32 %v117, 1.442695
    %v120 = vpow.pop %v119
    %v121 = vmul.f32 %v118, 1.442695
    %v122 = vpow.pop %v121
    %v123 = vsel %vm99, %v81, -1e+09
    %v124 = vsel %vm100, %v82, -1e+09
    %v125 = vsel %vm73, %v123, -inf
    %v126 = vrot.slane %v125, 4
    %v127 = vmax.f32 %v125, %v126
    %v128 = vrot.slane %v127, 2
    %v129 = vmax.f32 %v127, %v128
    %v130 = vrot.slane %v129, 1
    %v131 = vmax.f32 %v129, %v130
    %v132 = vsel %vm73, %v124, -inf
    %v133 = vrot.slane %v132, 4
    %v134 = vmax.f32 %v132, %v133
    %v135 = vrot.slane %v134, 2
    %v136 = vmax.f32 %v134, %v135
    %v137 = vrot.slane %v136, 1
    %v138 = vmax.f32 %v136, %v137
    %vm139 = vcmp.gt.f32.partialorder %v131, -5e+08
    %vm140 = vcmp.gt.f32.partialorder %v138, -5e+08
    %v141 = vsel %vm139, %v131, %v110
    %v142 = vsel %vm140, %v138, %v116
    %v143 = vsub.f32 %v110, %v141
    %v144 = vsub.f32 %v116, %v142
    %v145 = vmul.f32 %v143, 1.442695
    %v146 = vpow.pop %v145
    %v147 = vmul.f32 %v144, 1.442695
    %v148 = vpow.pop %v147
    %v149 = vmul.f32 %v120, %v146
    %v150 = vmul.f32 %v122, %v148
    %v151 = vmul.f32 %v103, %v149
    %v152 = vmul.f32 %v104, %v150
    %v153 = vsel %vm139, 1, 0
    %v154 = vsel %vm140, 1, 0
    %vm155 = vcmp.eq.s32.totalorder %v153, 1
    %vm156 = vcmp.eq.s32.totalorder %v154, 1
    %v157 = vsel %vm155, %v151, 1.0
    %v158 = vsel %vm156, %v152, 1.0
    %v159 = vsel %vm73, %v157, 0.0
    %v160 = vrot.slane %v159, 4
    %v161 = vadd.f32 %v159, %v160
    %v162 = vrot.slane %v161, 2
    %v163 = vadd.f32 %v161, %v162
    %v164 = vrot.slane %v163, 1
    %v165 = vadd.f32 %v163, %v164
    %v166 = vsel %vm73, %v158, 0.0
    %v167 = vrot.slane %v166, 4
    %v168 = vadd.f32 %v166, %v167
    %v169 = vrot.slane %v168, 2
    %v170 = vadd.f32 %v168, %v169
    %v171 = vrot.slane %v170, 1
    %v172 = vadd.f32 %v170, %v171
    %v173 = vrcp.pop %v165
    %v174 = vrcp.pop %v172
    %v175 = vmul.f32 %v157, %v173
    %v176 = vmul.f32 %v158, %v174
    %v177 = vmul.f32 %v61, %v175
    %v178 = vmul.f32 %v62, %v176
    %v179 = vsel %vm73, %v177, 0.0
    %v180 = vrot.slane %v179, 4
    %v181 = vadd.f32 %v179, %v180
    %v182 = vrot.slane %v181, 2
    %v183 = vadd.f32 %v181, %v182
    %v184 = vrot.slane %v183, 1
    %v185 = vadd.f32 %v183, %v184
    %v186 = vsel %vm73, %v178, 0.0
    %v187 = vrot.slane %v186, 4
    %v188 = vadd.f32 %v186, %v187
    %v189 = vrot.slane %v188, 2
    %v190 = vadd.f32 %v188, %v189
    %v191 = vrot.slane %v190, 1
    %v192 = vadd.f32 %v190, %v191
    %v193 = vcombine.high %v175, 0.0
    %v195 = vunpack.c.l.s4 1983009808
    %v196 = vunpack.c.0.s8 %v195
    %v197 = vlaneseq
    %v198 = vshrl.u32 %v197, 7
    %v199 = vsub.s32 %v196, %v198
    %v200 = vrot.slane %v175, %v199
    %v202 = vunpack.c.l.s4 1983009808
    %v203 = vunpack.c.0.s8 %v202
    %v204 = vlaneseq
    %v205 = vshrl.u32 %v204, 7
    %v206 = vsub.s32 %v203, %v205
    %v207 = vrot.slane %v193, %v206
    %v208 = vcombine.high %v176, 0.0
    %v210 = vunpack.c.l.s4 1983009808
    %v211 = vunpack.c.0.s8 %v210
    %v212 = vlaneseq
    %v213 = vshrl.u32 %v212, 7
    %v214 = vsub.s32 %v211, %v213
    %v215 = vrot.slane %v176, %v214
    %v217 = vunpack.c.l.s4 1983009808
    %v218 = vunpack.c.0.s8 %v217
    %v219 = vlaneseq
    %v220 = vshrl.u32 %v219, 7
    %v221 = vsub.s32 %v218, %v220
    %v222 = vrot.slane %v208, %v221
    %v223 = vcombine.low %v200, %v215
    %v224 = vcombine.high %v200, %v215
    %v226 = vunpack.c.l.s4 1934713408
    %v227 = vunpack.c.0.s8 %v226
    %v228 = vlaneseq
    %v229 = vshrl.u32 %v228, 7
    %v230 = vsub.s32 %v227, %v229
    %v231 = vrot.slane %v223, %v230
    %v233 = vunpack.c.l.s4 1934713408
    %v234 = vunpack.c.0.s8 %v233
    %v235 = vlaneseq
    %v236 = vshrl.u32 %v235, 7
    %v237 = vsub.s32 %v234, %v236
    %v238 = vrot.slane %v224, %v237
    %v239 = vcombine.low %v207, %v222
    %v240 = vcombine.high %v207, %v222
    %v242 = vunpack.c.l.s4 1934713408
    %v243 = vunpack.c.0.s8 %v242
    %v244 = vlaneseq
    %v245 = vshrl.u32 %v244, 7
    %v246 = vsub.s32 %v243, %v245
    %v247 = vrot.slane %v239, %v246
    %v249 = vunpack.c.l.s4 1934713408
    %v250 = vunpack.c.0.s8 %v249
    %v251 = vlaneseq
    %v252 = vshrl.u32 %v251, 7
    %v253 = vsub.s32 %v250, %v252
    %v254 = vrot.slane %v240, %v253
    %v255 = vcombine.high %v231, 0.0
    %v256 = vcombine.high %v238, 0.0
    %v257 = vcombine.high %v247, 0.0
    %v258 = vcombine.high %v254, 0.0
    %260 = vrot.lane.b32.xlu0 %v255, 32
    %v261 = vpop.permute.xlu0 %260
    %264 = vrot.lane.b32.xlu0 %v238, 64
    %v265 = vpop.permute.xlu0 %264
    %268 = vrot.lane.b32.xlu0 %v256, 96
    %v269 = vpop.permute.xlu0 %268
    %272 = vrot.lane.b32.xlu0 %v257, 32
    %v273 = vpop.permute.xlu0 %272
    %276 = vrot.lane.b32.xlu0 %v254, 64
    %v277 = vpop.permute.xlu0 %276
    %280 = vrot.lane.b32.xlu0 %v258, 96
    %v281 = vpop.permute.xlu0 %280
    %v283 = vsel %vm73, %v231, %v261
    %vm284 = vcmask 523264
    %v285 = vsel %vm284, %v283, %v265
    %vm286 = vcmask 785408
    %v287 = vsel %vm286, %v285, %v269
    %v288 = vsel %vm73, %v247, %v273
    %v289 = vsel %vm284, %v288, %v277
    %v290 = vsel %vm286, %v289, %v281
    %vm293 = vcmask 1041409
    %v294 = vsel %vm293, %v192, %v185
    %vm296 = vcmask 254976
    %297 = vst.msk [vmem:[#allocation9] sm:$0x3] %vm296, %v294
    %v300 = vcombine.low %v287, %v290
    %v302 = vunpack.c.l.s4 1983009808
    %v303 = vunpack.c.0.s8 %v302
    %v304 = vlaneseq
    %v305 = vshrl.u32 %v304, 7
    %v306 = vsub.s32 %v303, %v305
    %v307 = vrot.slane %v300, %v306
    %309 = vst [vmem:[#allocation10] sm:$0xf] %v307
    // Predicated region
    $region30: #{tpu_custom_call.1} parent=1 // pred_check
      _
    $region31: #{tpu_custom_call.1} parent=1 // pred_check_branch
      %311 = sbr.rel (0) target = $region33
    $region32: #{tpu_custom_call.1} parent=1 // pred_region
      %s313 = ssub.s32 32, 32
      %314 = vsyncadd [#allocation5], %s313
      %s316 = sshll.u32 [#allocation9], 4
      %s317 = int_to_ptr.vmem [resolvable:$true] %s316
      %319 = dma.vmem_to_hbm [thread:$0]  %s317, 32, %s4, [#allocation5]
    $region33: #{tpu_custom_call.1} parent=1 // pred_fallthru
      _
    // Predicated region
    $region34: #{tpu_custom_call.1} parent=1 // pred_check
      _
    $region35: #{tpu_custom_call.1} parent=1 // pred_check_branch
      %321 = sbr.rel (0) target = $region37
    $region36: #{tpu_custom_call.1} parent=1 // pred_region
      %s323 = ssub.s32 64, 64
      %324 = vsyncadd [#allocation11], %s323
      %s326 = sshll.u32 [#allocation10], 4
      %s327 = int_to_ptr.vmem [resolvable:$true] %s326
      %329 = dma.vmem_to_hbm [thread:$0]  %s327, 64, %s5, [#allocation11]
    $region37: #{tpu_custom_call.1} parent=1 // pred_fallthru
      _
    // Predicated region
    $region38: #{tpu_custom_call.1} parent=1 // pred_check
      _
    $region39: #{tpu_custom_call.1} parent=1 // pred_check_branch
      %331 = sbr.rel (0) target = $region41
    $region40: #{tpu_custom_call.1} parent=1 // pred_region
      %332 = dma.done [#allocation5], 32
    $region41: #{tpu_custom_call.1} parent=1 // pred_fallthru
      _
    // Predicated region
    $region42: #{tpu_custom_call.1} parent=1 // pred_check
      _
    $region43: #{tpu_custom_call.1} parent=1 // pred_check_branch
      %334 = sbr.rel (0) target = $region45
    $region44: #{tpu_custom_call.1} parent=1 // pred_region
      %335 = dma.done [#allocation11], 64
    $region45: #{tpu_custom_call.1} parent=1 // pred_fallthru
      _
    %336 = vsyncpa [#allocation4], 1
    %337 = vsyncpa [#allocation7], 1
    %338 = vsyncpa [#allocation5], 1
    %339 = vsyncpa [#allocation11], 1

</llo_original>
